<compile_context>
chip_gen: v5e
topology: v5e:2x2
jax: 0.10.0
libtpu: 0.0.40
codegen_flags: <defaults>
</compile_context>

<pallas_src>
import jax
import jax.numpy as jnp
from jax.experimental import pallas as pl
from jax.experimental.pallas import tpu as pltpu

OUT_FEATURES_DIM = 128   # hidden width of the discriminator
PARAM_RELU = 0.01        # LeakyReLU negative slope


def _disc_kernel(x_ref, w1_ref, b1_ref, w2t_ref, b2_ref, o_ref):
    """Fused MLP discriminator forward for one batch tile.

    x_ref  : (TB, D)  f32/bf16 VMEM  batch tile of flattened images (streamed)
    w1_ref : (D, H)   bf16     VMEM  resident across the grid
    b1_ref : (1, H)   f32      VMEM
    w2t_ref: (1, H)   f32      VMEM  w2 stored as a row
    b2_ref : (1,)     f32      SMEM  scalar bias
    o_ref  : (1, TB)  f32      VMEM  lane-dense probability row
    """
    # Linear 1 (MXU): cast x to bf16 in-kernel (no host pad/cast round trip;
    # x reaches HBM->VMEM as a single read), accumulate in f32.
    x_bf = x_ref[...].astype(jnp.bfloat16)
    h = jnp.dot(x_bf, w1_ref[...], preferred_element_type=jnp.float32)
    h = h + b1_ref[...]
    # LeakyReLU(0.01) (VPU, f32)
    h = jnp.where(h > 0, h, PARAM_RELU * h)
    # Linear 2: contract the hidden dim of both operands -> (1, TB) lane-dense row
    logit = jax.lax.dot_general(
        w2t_ref[...], h,
        dimension_numbers=(((1,), (1,)), ((), ())),
        preferred_element_type=jnp.float32,
    ) + b2_ref[0]
    # Exact sigmoid: kernel is HBM-bound, the exact reciprocal on one row is
    # free and guarantees p <= 1.0 for downstream log(1 - p) GAN losses.
    o_ref[...] = (1.0 / (1.0 + jnp.exp(-logit))).astype(o_ref.dtype)


def prepare_params(w1, b1, w2, b2):
    """One-time (per parameter-update) prep, hoisted out of the forward jit.

    w1 is cast to bf16 (halves its HBM bytes, 2x MXU rate); b1/w2 are laid out
    as (1, H) rows; b2 becomes a (1,) SMEM scalar.
    """
    w1_bf = w1.astype(jnp.bfloat16)                  # (D, H)
    b1_2d = b1.reshape(1, -1).astype(jnp.float32)    # (1, H)
    w2t = w2.reshape(1, -1).astype(jnp.float32)      # (1, H)
    b2_1d = b2.reshape(1).astype(jnp.float32)        # (1,)
    return w1_bf, b1_2d, w2t, b2_1d


@jax.jit
def discriminator_forward(x, w1_bf, b1_2d, w2t, b2_1d):
    """x: (B, img_dim) f32 (or bf16 from an upstream producer).

    Returns sigmoid probabilities with shape (B, 1), matching the PyTorch module.
    """
    B, D = x.shape
    H = w1_bf.shape[1]

    # Batch tiling: whole batch in one grid step for small/medium B (a block
    # dim equal to the full array dim is always legal); 1024-row tiles for
    # large B so the "parallel" grid axis spreads work over both v7x
    # TensorCores and DMA efficiency stays near the HBM roofline.
    if B <= 1024:
        tile_b = B
    else:
        tile_b = 1024
    grid_b = pl.cdiv(B, tile_b)
    Bp = grid_b * tile_b          # only the tiny (1, Bp) output slab is padded

    # VMEM budget from the actual tile footprint + slack (no artificial floor).
    vmem_bytes = (
        2 * tile_b * D * x.dtype.itemsize   # double-buffered x tile (streamed)
        + 2 * D * H * 2                     # w1 (bf16, resident)
        + 4 * H * 4                         # b1 + w2t rows (double-buffered)
        + 2 * tile_b * 4                    # output row
        + tile_b * H * 4                    # f32 hidden intermediate h
        + (8 << 20)                         # slack for compiler scratch
    )

    out = pl.pallas_call(
        _disc_kernel,
        out_shape=jax.ShapeDtypeStruct((1, Bp), jnp.float32),
        grid_spec=pltpu.PrefetchScalarGridSpec(
            num_scalar_prefetch=0,
            grid=(grid_b,),
            in_specs=[
                pl.BlockSpec((tile_b, D), lambda i: (i, 0)),        # x tile, unpadded
                pl.BlockSpec((D, H), lambda i: (0, 0)),             # w1 (resident bf16)
                pl.BlockSpec((1, H), lambda i: (0, 0)),             # b1 row
                pl.BlockSpec((1, H), lambda i: (0, 0)),             # w2 as a row
                pl.BlockSpec(memory_space=pltpu.MemorySpace.SMEM),  # b2 scalar
            ],
            out_specs=pl.BlockSpec((1, tile_b), lambda i: (0, i)),  # lane-dense
        ),
        compiler_params=pltpu.CompilerParams(
            dimension_semantics=("parallel",),
            vmem_limit_bytes=int(vmem_bytes),
        ),
    )(x, w1_bf, b1_2d, w2t, b2_1d)

    # Back to the PyTorch (B, 1) layout; drop output padding (garbage rows from
    # a partial last batch tile live only in lanes >= B and are sliced away).
    return out[0, :B].reshape(B, 1)


def init_params(key, img_dim):
    """Deterministic init mimicking PyTorch nn.Linear default (uniform +-1/sqrt(fan_in))."""
    k1, k2, k3, k4 = jax.random.split(key, 4)
    bound1 = 1.0 / jnp.sqrt(jnp.float32(img_dim))
    bound2 = 1.0 / jnp.sqrt(jnp.float32(OUT_FEATURES_DIM))
    w1 = jax.random.uniform(k1, (img_dim, OUT_FEATURES_DIM), jnp.float32, -bound1, bound1)
    b1 = jax.random.uniform(k2, (OUT_FEATURES_DIM,), jnp.float32, -bound1, bound1)
    w2 = jax.random.uniform(k3, (OUT_FEATURES_DIM, 1), jnp.float32, -bound2, bound2)
    b2 = jax.random.uniform(k4, (1,), jnp.float32, -bound2, bound2)
    return w1, b1, w2, b2


def reference_forward(x, w1, b1, w2, b2):
    """Pure-JAX reference mirroring the kernel's bf16 cast of x / w1 on the MXU."""
    # NOTE: bf16 streaming of x/w1 is a deliberate precision trade-off vs the
    # pure-f32 PyTorch module; the f32 accumulate keeps the error ~1e-3.
    xq = x.astype(jnp.bfloat16).astype(jnp.float32)
    w1q = w1.astype(jnp.bfloat16).astype(jnp.float32)
    h = xq @ w1q + b1
    h = jnp.where(h > 0, h, PARAM_RELU * h)
    logit = h @ w2 + b2
    return jax.nn.sigmoid(logit)


if __name__ == "__main__":
    key = jax.random.PRNGKey(0)
    kx, kp = jax.random.split(key)

    B = 16          # small demo batch -> single full-dim grid step
    IMG_DIM = 784   # MNIST-style flattened image; exercises the unaligned-D path

    x = jax.random.normal(kx, (B, IMG_DIM), dtype=jnp.float32)
    w1, b1, w2, b2 = init_params(kp, IMG_DIM)

    # Weight prep is hoisted out of the per-call forward (once per param update).
    w1_bf, b1_2d, w2t, b2_1d = prepare_params(w1, b1, w2, b2)

    out = discriminator_forward(x, w1_bf, b1_2d, w2t, b2_1d)
    out = jax.block_until_ready(out)

    ref = reference_forward(x, w1, b1, w2, b2)
    assert out.shape == (B, 1)
    # Tolerance absorbs bf16 streaming of x/w1 (f32 accumulate, exact sigmoid).
    assert jnp.allclose(out, ref, atol=2e-3, rtol=2e-3), "mismatch vs reference"

    print("KERNEL_OK")
</pallas_src>

<mosaic_0001>
module attributes {stable_mosaic.version = 11 : i64} {
  func.func @_disc_kernel(%arg0: i32, %arg1: memref<16x784xf32, #tpu.memory_space<vmem>>, %arg2: memref<784x128xbf16, #tpu.memory_space<vmem>>, %arg3: memref<1x128xf32, #tpu.memory_space<vmem>>, %arg4: memref<1x128xf32, #tpu.memory_space<vmem>>, %arg5: memref<1xf32, #tpu.memory_space<smem>>, %arg6: memref<1x16xf32, #tpu.memory_space<vmem>>) attributes {dimension_semantics = [#tpu.dimension_semantics<parallel>], iteration_bounds = array<i64: 1>, scalar_prefetch = 0 : i64, scratch_operands = 0 : i64, tpu.core_type = #tpu.core_type<tc>, window_params = [{transform_indices = @transform_0, window_bounds = array<i64: 16, 784>}, {pipeline_mode = #tpu.pipeline_mode<synchronous>, transform_indices = @transform_1, window_bounds = array<i64: 784, 128>}, {pipeline_mode = #tpu.pipeline_mode<synchronous>, transform_indices = @transform_2, window_bounds = array<i64: 1, 128>}, {pipeline_mode = #tpu.pipeline_mode<synchronous>, transform_indices = @transform_3, window_bounds = array<i64: 1, 128>}, {transform_indices = @transform_4, window_bounds = array<i64: 1>}, {transform_indices = @transform_5, window_bounds = array<i64: 1, 16>}]} {
    %c0 = arith.constant 0 : index
    %c0_0 = arith.constant 0 : index
    %0 = vector.load %arg1[%c0, %c0_0] : memref<16x784xf32, #tpu.memory_space<vmem>>, vector<16x784xf32>
    %1 = arith.truncf %0 : vector<16x784xf32> to vector<16x784xbf16>
    %c0_1 = arith.constant 0 : index
    %c0_2 = arith.constant 0 : index
    %2 = vector.load %arg2[%c0_1, %c0_2] : memref<784x128xbf16, #tpu.memory_space<vmem>>, vector<784x128xbf16>
    %cst = arith.constant dense<0.000000e+00> : vector<16x128xf32>
    %3 = tpu.matmul %1, %2, %cst {dimension_numbers = #tpu.dot_dimension_numbers<[1], [0], [0], [1], [0, 0, 1, 1], [], []>} : vector<16x784xbf16>, vector<784x128xbf16>, vector<16x128xf32> -> vector<16x128xf32>
    %c0_3 = arith.constant 0 : index
    %c0_4 = arith.constant 0 : index
    %4 = vector.load %arg3[%c0_3, %c0_4] : memref<1x128xf32, #tpu.memory_space<vmem>>, vector<1x128xf32>
    %5 = vector.broadcast %4 : vector<1x128xf32> to vector<16x128xf32>
    %6 = arith.addf %3, %5 : vector<16x128xf32>
    %cst_5 = arith.constant 0.000000e+00 : f32
    %7 = vector.broadcast %cst_5 : f32 to vector<16x128xf32>
    %8 = arith.cmpf ogt, %6, %7 : vector<16x128xf32>
    %cst_6 = arith.constant 0.00999999977 : f32
    %9 = vector.broadcast %cst_6 : f32 to vector<16x128xf32>
    %10 = arith.mulf %9, %6 : vector<16x128xf32>
    %11 = arith.select %8, %6, %10 : vector<16x128xi1>, vector<16x128xf32>
    %c0_7 = arith.constant 0 : index
    %c0_8 = arith.constant 0 : index
    %12 = vector.load %arg4[%c0_7, %c0_8] : memref<1x128xf32, #tpu.memory_space<vmem>>, vector<1x128xf32>
    %cst_9 = arith.constant dense<0.000000e+00> : vector<1x16xf32>
    %13 = tpu.matmul %12, %11, %cst_9 {dimension_numbers = #tpu.dot_dimension_numbers<[1], [1], [0], [0], [0, 0, 1, 0], [], []>} : vector<1x128xf32>, vector<16x128xf32>, vector<1x16xf32> -> vector<1x16xf32>
    %c0_10 = arith.constant 0 : index
    %14 = memref.load %arg5[%c0_10] : memref<1xf32, #tpu.memory_space<smem>>
    %15 = vector.broadcast %14 : f32 to vector<1x16xf32>
    %16 = arith.addf %13, %15 : vector<1x16xf32>
    %cst_11 = arith.constant 0.000000e+00 : f32
    %17 = vector.broadcast %cst_11 : f32 to vector<1x16xf32>
    %18 = arith.subf %17, %16 : vector<1x16xf32>
    %19 = math.exp %18 : vector<1x16xf32>
    %cst_12 = arith.constant 1.000000e+00 : f32
    %20 = vector.broadcast %cst_12 : f32 to vector<1x16xf32>
    %21 = arith.addf %20, %19 : vector<1x16xf32>
    %cst_13 = arith.constant 1.000000e+00 : f32
    %22 = vector.broadcast %cst_13 : f32 to vector<1x16xf32>
    %23 = arith.divf %22, %21 : vector<1x16xf32>
    %c0_14 = arith.constant 0 : index
    %c0_15 = arith.constant 0 : index
    %24 = vector.load %arg6[%c0_14, %c0_15] : memref<1x16xf32, #tpu.memory_space<vmem>>, vector<1x16xf32>
    tpu.vector_store %arg6[%c0_14, %c0_15], %23 {strides = array<i32>} : memref<1x16xf32, #tpu.memory_space<vmem>>, vector<1x16xf32>,
    return
  }
  func.func @transform_0(%arg0: i32) -> (i32, i32) {
    %c0_i32 = arith.constant 0 : i32
    %c0_i32_0 = arith.constant 0 : i32
    return %arg0, %c0_i32 : i32, i32
  }
  func.func @transform_1(%arg0: i32) -> (i32, i32) {
    %c0_i32 = arith.constant 0 : i32
    %c0_i32_0 = arith.constant 0 : i32
    %c0_i32_1 = arith.constant 0 : i32
    return %c0_i32, %c0_i32_0 : i32, i32
  }
  func.func @transform_2(%arg0: i32) -> (i32, i32) {
    %c0_i32 = arith.constant 0 : i32
    %c0_i32_0 = arith.constant 0 : i32
    %c0_i32_1 = arith.constant 0 : i32
    return %c0_i32, %c0_i32_0 : i32, i32
  }
  func.func @transform_3(%arg0: i32) -> (i32, i32) {
    %c0_i32 = arith.constant 0 : i32
    %c0_i32_0 = arith.constant 0 : i32
    %c0_i32_1 = arith.constant 0 : i32
    return %c0_i32, %c0_i32_0 : i32, i32
  }
  func.func @transform_4(%arg0: i32) -> i32 {
    %c0_i32 = arith.constant 0 : i32
    %c0_i32_0 = arith.constant 0 : i32
    return %c0_i32 : i32
  }
  func.func @transform_5(%arg0: i32) -> (i32, i32) {
    %c0_i32 = arith.constant 0 : i32
    %c0_i32_0 = arith.constant 0 : i32
    return %c0_i32, %arg0 : i32, i32
  }
}

</mosaic_0001>

<llo_original>
// kernel: discriminator_forward.1
$region0: #{discriminator_forward.1}
  #allocation0 [shape = 'u32[]', space=smem, size = 0x4, offset = 0x4, fixed_abs, tag = 'smem constant byte address 0x4 - core index']
  #allocation1 [shape = 'u32[72,128]{1,0:T(1,128)}', space=vmem, size = 0x9000, scoped, tag = 'internal scratch']
  #allocation2 [shape = 'f32[1]{0:T(128)S(6)}', space=smem, size = 0x200, scoped, tag = 'scoped memory for discriminator_forward.1']
  %s0 = inlined_call_operand.hbm [shape: f32[16,784], index: 0, kind: input, shape index: {}]
  %s1 = inlined_call_operand.hbm [shape: bf16[784,128], index: 1, kind: input, shape index: {}]
  %s2 = inlined_call_operand.vmem [shape: f32[1,128], index: 2, kind: input, shape index: {}]
  %s3 = inlined_call_operand.vmem [shape: f32[1,128], index: 3, kind: input, shape index: {}]
  %s4 = inlined_call_operand.<no memory space> [shape: f32[1], index: 4, kind: input, shape index: {}]
  %s5 = inlined_call_operand.hbm [shape: f32[1,16], index: 5, kind: output, shape index: {}]
  %s6 = sld [smem:[#allocation0]]
  $region38: #{discriminator_forward.1} parent=0
    _
  %s8 = ssub.s32 1, %s6
  %s9 = scalar_select 0, %s8, %s6
  %10 = sst [smem:[#allocation2]] %s4
  $region1: #{discriminator_forward.1} parent=0
    #allocation3 [shape = 'u8[57344]{0}', space=vmem, size = 0xe000, scoped, tag = 'input window, operand 0, single buffered']
    #allocation4 [shape = 's32[1]{0}', space=sflag, size = 0x4, scoped, tag = 'scoped memory for discriminator_forward.1']
    #allocation5 [shape = 's32[1]{0}', space=sflag, size = 0x4, scoped, tag = 'scoped memory for discriminator_forward.1']
    #allocation6 [shape = 'u8[200704]{0}', space=vmem, size = 0x31000, scoped, tag = 'input window, operand 1, single buffered']
    #allocation7 [shape = 's32[1]{0}', space=sflag, size = 0x4, scoped, tag = 'scoped memory for discriminator_forward.1']
    #allocation8 [shape = 'u8[512]{0}', space=vmem, size = 0x400, scoped, tag = 'output window, operand 0, single buffered']
    %11 = vsyncpa [#allocation4], 0
    %12 = vsyncpa [#allocation7], 0
    %13 = vsyncpa [#allocation5], 0
    // Predicated region
    $region2: #{discriminator_forward.1} parent=1 // pred_check
      _
    $region3: #{discriminator_forward.1} parent=1 // pred_check_branch
      %15 = sbr.rel (0) target = $region5
    $region4: #{discriminator_forward.1} parent=1 // pred_region
      %17 = vsyncadd [#allocation4], 0
      %s18 = sshll.u32 %s0, 4
      %s19 = int_to_ptr.hbm [resolvable:$true] %s18
      %s20 = sshll.u32 [#allocation3], 4
      %s21 = int_to_ptr.vmem [resolvable:$true] %s20
      %26 = dma.hbm_to_vmem [thread:$0]  %s19, 1792, %s21, [#allocation4], 896, 896, 56
    $region5: #{discriminator_forward.1} parent=1 // pred_fallthru
      _
    // Predicated region
    $region6: #{discriminator_forward.1} parent=1 // pred_check
      _
    $region7: #{discriminator_forward.1} parent=1 // pred_check_branch
      %28 = sbr.rel (0) target = $region9
    $region8: #{discriminator_forward.1} parent=1 // pred_region
      %30 = vsyncadd [#allocation7], 0
      %s31 = sshll.u32 %s1, 4
      %s32 = int_to_ptr.hbm [resolvable:$true] %s31
      %s33 = sshll.u32 [#allocation6], 4
      %s34 = int_to_ptr.vmem [resolvable:$true] %s33
      %39 = dma.hbm_to_vmem [thread:$0]  %s32, 6272, %s34, [#allocation7], 64, 64, 4
    $region9: #{discriminator_forward.1} parent=1 // pred_fallthru
      _
    // Predicated region
    $region10: #{discriminator_forward.1} parent=1 // pred_check
      _
    $region11: #{discriminator_forward.1} parent=1 // pred_check_branch
      %41 = sbr.rel (0) target = $region13
    $region12: #{discriminator_forward.1} parent=1 // pred_region
      _
    $region13: #{discriminator_forward.1} parent=1 // pred_fallthru
      _
    // Predicated region
    $region14: #{discriminator_forward.1} parent=1 // pred_check
      _
    $region15: #{discriminator_forward.1} parent=1 // pred_check_branch
      %43 = sbr.rel (0) target = $region17
    $region16: #{discriminator_forward.1} parent=1 // pred_region
      _
    $region17: #{discriminator_forward.1} parent=1 // pred_fallthru
      _
    // Predicated region
    $region18: #{discriminator_forward.1} parent=1 // pred_check
      _
    $region19: #{discriminator_forward.1} parent=1 // pred_check_branch
      %45 = sbr.rel (0) target = $region21
    $region20: #{discriminator_forward.1} parent=1 // pred_region
      _
    $region21: #{discriminator_forward.1} parent=1 // pred_fallthru
      _
    // Predicated region
    $region22: #{discriminator_forward.1} parent=1 // pred_check
      _
    $region23: #{discriminator_forward.1} parent=1 // pred_check_branch
      %47 = sbr.rel (0) target = $region25
    $region24: #{discriminator_forward.1} parent=1 // pred_region
      %49 = dma.done [#allocation4], 1792
    $region25: #{discriminator_forward.1} parent=1 // pred_fallthru
      _
    // Predicated region
    $region26: #{discriminator_forward.1} parent=1 // pred_check
      _
    $region27: #{discriminator_forward.1} parent=1 // pred_check_branch
      %51 = sbr.rel (0) target = $region29
    $region28: #{discriminator_forward.1} parent=1 // pred_region
      %53 = dma.done [#allocation7], 6272
    $region29: #{discriminator_forward.1} parent=1 // pred_fallthru
      _
    %v55 = vld [vmem:[#allocation3] sm:$0xff]
    %v56 = vld [vmem:[#allocation3 + $0x8] sm:$0xff]
    %v57 = vld [vmem:[#allocation3 + $0x10] sm:$0xff]
    %v58 = vld [vmem:[#allocation3 + $0x18] sm:$0xff]
    %v59 = vld [vmem:[#allocation3 + $0x20] sm:$0xff]
    %v60 = vld [vmem:[#allocation3 + $0x28] sm:$0xff]
    %v61 = vld [vmem:[#allocation3 + $0x30] sm:$0xff]
    %v62 = vld [vmem:[#allocation3 + $0x38] sm:$0xff]
    %v63 = vld [vmem:[#allocation3 + $0x40] sm:$0xff]
    %v64 = vld [vmem:[#allocation3 + $0x48] sm:$0xff]
    %v65 = vld [vmem:[#allocation3 + $0x50] sm:$0xff]
    %v66 = vld [vmem:[#allocation3 + $0x58] sm:$0xff]
    %v67 = vld [vmem:[#allocation3 + $0x60] sm:$0xff]
    %v68 = vld [vmem:[#allocation3 + $0x68] sm:$0xff]
    %v69 = vpack.c.bf16 %v62, %v55
    %v70 = vpack.c.bf16 %v63, %v56
    %v71 = vpack.c.bf16 %v64, %v57
    %v72 = vpack.c.bf16 %v65, %v58
    %v73 = vpack.c.bf16 %v66, %v59
    %v74 = vpack.c.bf16 %v67, %v60
    %v75 = vpack.c.bf16 %v68, %v61
    %v76 = vld [vmem:[#allocation6] sm:$0xf]
    %v77 = vld [vmem:[#allocation6 + $0x4] sm:$0xf]
    %v78 = vld [vmem:[#allocation6 + $0x8] sm:$0xf]
    %v79 = vld [vmem:[#allocation6 + $0xc] sm:$0xf]
    %v80 = vld [vmem:[#allocation6 + $0x10] sm:$0xf]
    %v81 = vld [vmem:[#allocation6 + $0x14] sm:$0xf]
    %v82 = vld [vmem:[#allocation6 + $0x18] sm:$0xf]
    %v83 = vld [vmem:[#allocation6 + $0x1c] sm:$0xf]
    %v84 = vld [vmem:[#allocation6 + $0x20] sm:$0xf]
    %v85 = vld [vmem:[#allocation6 + $0x24] sm:$0xf]
    %v86 = vld [vmem:[#allocation6 + $0x28] sm:$0xf]
    %v87 = vld [vmem:[#allocation6 + $0x2c] sm:$0xf]
    %v88 = vld [vmem:[#allocation6 + $0x30] sm:$0xf]
    %v89 = vld [vmem:[#allocation6 + $0x34] sm:$0xf]
    %v90 = vld [vmem:[#allocation6 + $0x38] sm:$0xf]
    %v91 = vld [vmem:[#allocation6 + $0x3c] sm:$0xf]
    %v92 = vld [vmem:[#allocation6 + $0x40] sm:$0xf]
    %v93 = vld [vmem:[#allocation6 + $0x44] sm:$0xf]
    %v94 = vld [vmem:[#allocation6 + $0x48] sm:$0xf]
    %v95 = vld [vmem:[#allocation6 + $0x4c] sm:$0xf]
    %v96 = vld [vmem:[#allocation6 + $0x50] sm:$0xf]
    %v97 = vld [vmem:[#allocation6 + $0x54] sm:$0xf]
    %v98 = vld [vmem:[#allocation6 + $0x58] sm:$0xf]
    %v99 = vld [vmem:[#allocation6 + $0x5c] sm:$0xf]
    %v100 = vld [vmem:[#allocation6 + $0x60] sm:$0xf]
    %v101 = vld [vmem:[#allocation6 + $0x64] sm:$0xf]
    %v102 = vld [vmem:[#allocation6 + $0x68] sm:$0xf]
    %v103 = vld [vmem:[#allocation6 + $0x6c] sm:$0xf]
    %v104 = vld [vmem:[#allocation6 + $0x70] sm:$0xf]
    %v105 = vld [vmem:[#allocation6 + $0x74] sm:$0xf]
    %v106 = vld [vmem:[#allocation6 + $0x78] sm:$0xf]
    %v107 = vld [vmem:[#allocation6 + $0x7c] sm:$0xf]
    %v108 = vld [vmem:[#allocation6 + $0x80] sm:$0xf]
    %v109 = vld [vmem:[#allocation6 + $0x84] sm:$0xf]
    %v110 = vld [vmem:[#allocation6 + $0x88] sm:$0xf]
    %v111 = vld [vmem:[#allocation6 + $0x8c] sm:$0xf]
    %v112 = vld [vmem:[#allocation6 + $0x90] sm:$0xf]
    %v113 = vld [vmem:[#allocation6 + $0x94] sm:$0xf]
    %v114 = vld [vmem:[#allocation6 + $0x98] sm:$0xf]
    %v115 = vld [vmem:[#allocation6 + $0x9c] sm:$0xf]
    %v116 = vld [vmem:[#allocation6 + $0xa0] sm:$0xf]
    %v117 = vld [vmem:[#allocation6 + $0xa4] sm:$0xf]
    %v118 = vld [vmem:[#allocation6 + $0xa8] sm:$0xf]
    %v119 = vld [vmem:[#allocation6 + $0xac] sm:$0xf]
    %v120 = vld [vmem:[#allocation6 + $0xb0] sm:$0xf]
    %v121 = vld [vmem:[#allocation6 + $0xb4] sm:$0xf]
    %v122 = vld [vmem:[#allocation6 + $0xb8] sm:$0xf]
    %v123 = vld [vmem:[#allocation6 + $0xbc] sm:$0xf]
    %v124 = vld [vmem:[#allocation6 + $0xc0] sm:$0xf]
    %v125 = vld [vmem:[#allocation6 + $0xc4] sm:$0xf]
    %v126 = vld [vmem:[#allocation6 + $0xc8] sm:$0xf]
    %v127 = vld [vmem:[#allocation6 + $0xcc] sm:$0xf]
    %v128 = vld [vmem:[#allocation6 + $0xd0] sm:$0xf]
    %v129 = vld [vmem:[#allocation6 + $0xd4] sm:$0xf]
    %v130 = vld [vmem:[#allocation6 + $0xd8] sm:$0xf]
    %v131 = vld [vmem:[#allocation6 + $0xdc] sm:$0xf]
    %v132 = vld [vmem:[#allocation6 + $0xe0] sm:$0xf]
    %v133 = vld [vmem:[#allocation6 + $0xe4] sm:$0xf]
    %v134 = vld [vmem:[#allocation6 + $0xe8] sm:$0xf]
    %v135 = vld [vmem:[#allocation6 + $0xec] sm:$0xf]
    %v136 = vld [vmem:[#allocation6 + $0xf0] sm:$0xf]
    %v137 = vld [vmem:[#allocation6 + $0xf4] sm:$0xf]
    %v138 = vld [vmem:[#allocation6 + $0xf8] sm:$0xf]
    %v139 = vld [vmem:[#allocation6 + $0xfc] sm:$0xf]
    %v140 = vld [vmem:[#allocation6 + $0x100] sm:$0xf]
    %v141 = vld [vmem:[#allocation6 + $0x104] sm:$0xf]
    %v142 = vld [vmem:[#allocation6 + $0x108] sm:$0xf]
    %v143 = vld [vmem:[#allocation6 + $0x10c] sm:$0xf]
    %v144 = vld [vmem:[#allocation6 + $0x110] sm:$0xf]
    %v145 = vld [vmem:[#allocation6 + $0x114] sm:$0xf]
    %v146 = vld [vmem:[#allocation6 + $0x118] sm:$0xf]
    %v147 = vld [vmem:[#allocation6 + $0x11c] sm:$0xf]
    %v148 = vld [vmem:[#allocation6 + $0x120] sm:$0xf]
    %v149 = vld [vmem:[#allocation6 + $0x124] sm:$0xf]
    %v150 = vld [vmem:[#allocation6 + $0x128] sm:$0xf]
    %v151 = vld [vmem:[#allocation6 + $0x12c] sm:$0xf]
    %v152 = vld [vmem:[#allocation6 + $0x130] sm:$0xf]
    %v153 = vld [vmem:[#allocation6 + $0x134] sm:$0xf]
    %v154 = vld [vmem:[#allocation6 + $0x138] sm:$0xf]
    %v155 = vld [vmem:[#allocation6 + $0x13c] sm:$0xf]
    %v156 = vld [vmem:[#allocation6 + $0x140] sm:$0xf]
    %v157 = vld [vmem:[#allocation6 + $0x144] sm:$0xf]
    %v158 = vld [vmem:[#allocation6 + $0x148] sm:$0xf]
    %v159 = vld [vmem:[#allocation6 + $0x14c] sm:$0xf]
    %v160 = vld [vmem:[#allocation6 + $0x150] sm:$0xf]
    %v161 = vld [vmem:[#allocation6 + $0x154] sm:$0xf]
    %v162 = vld [vmem:[#allocation6 + $0x158] sm:$0xf]
    %v163 = vld [vmem:[#allocation6 + $0x15c] sm:$0xf]
    %v164 = vld [vmem:[#allocation6 + $0x160] sm:$0xf]
    %v165 = vld [vmem:[#allocation6 + $0x164] sm:$0xf]
    %v166 = vld [vmem:[#allocation6 + $0x168] sm:$0xf]
    %v167 = vld [vmem:[#allocation6 + $0x16c] sm:$0xf]
    %v168 = vld [vmem:[#allocation6 + $0x170] sm:$0xf]
    %v169 = vld [vmem:[#allocation6 + $0x174] sm:$0xf]
    %v170 = vld [vmem:[#allocation6 + $0x178] sm:$0xf]
    %v171 = vld [vmem:[#allocation6 + $0x17c] sm:$0xf]
    %v172 = vld [vmem:[#allocation6 + $0x180] sm:$0xf]
    %v173 = vld [vmem:[#allocation6 + $0x184] sm:$0xf]
    %v174 = vld [vmem:[%s2] sm:$0x1]
    %v176 = vperm.slane %v174, 0
    %v276 = vunpack.c.l.b16 %v76
    %v277 = vunpack.c.l.b16 %v77
    %v278 = vunpack.c.l.b16 %v78
    %v279 = vunpack.c.l.b16 %v79
    %v280 = vunpack.c.l.b16 %v80
    %v281 = vunpack.c.l.b16 %v81
    %v282 = vunpack.c.l.b16 %v82
    %v283 = vunpack.c.l.b16 %v83
    %v284 = vunpack.c.l.b16 %v84
    %v285 = vunpack.c.l.b16 %v85
    %v286 = vunpack.c.l.b16 %v86
    %v287 = vunpack.c.l.b16 %v87
    %v288 = vunpack.c.l.b16 %v88
    %v289 = vunpack.c.l.b16 %v89
    %v290 = vunpack.c.l.b16 %v90
    %v291 = vunpack.c.l.b16 %v91
    %v292 = vunpack.c.l.b16 %v92
    %v293 = vunpack.c.l.b16 %v93
    %v294 = vunpack.c.l.b16 %v94
    %v295 = vunpack.c.l.b16 %v95
    %v296 = vunpack.c.l.b16 %v96
    %v297 = vunpack.c.l.b16 %v97
    %v298 = vunpack.c.l.b16 %v98
    %v299 = vunpack.c.l.b16 %v99
    %v300 = vunpack.c.l.b16 %v100
    %v301 = vunpack.c.l.b16 %v101
    %v302 = vunpack.c.l.b16 %v102
    %v303 = vunpack.c.l.b16 %v103
    %v304 = vunpack.c.l.b16 %v104
    %v305 = vunpack.c.l.b16 %v105
    %v306 = vunpack.c.l.b16 %v106
    %v307 = vunpack.c.l.b16 %v107
    %v308 = vunpack.c.l.b16 %v108
    %v309 = vunpack.c.l.b16 %v109
    %v310 = vunpack.c.l.b16 %v110
    %v311 = vunpack.c.l.b16 %v111
    %v312 = vunpack.c.l.b16 %v112
    %v313 = vunpack.c.l.b16 %v113
    %v314 = vunpack.c.l.b16 %v114
    %v315 = vunpack.c.l.b16 %v115
    %v316 = vunpack.c.l.b16 %v116
    %v317 = vunpack.c.l.b16 %v117
    %v318 = vunpack.c.l.b16 %v118
    %v319 = vunpack.c.l.b16 %v119
    %v320 = vunpack.c.l.b16 %v120
    %v321 = vunpack.c.l.b16 %v121
    %v322 = vunpack.c.l.b16 %v122
    %v323 = vunpack.c.l.b16 %v123
    %v324 = vunpack.c.l.b16 %v124
    %v325 = vunpack.c.l.b16 %v125
    %v326 = vunpack.c.l.b16 %v126
    %v327 = vunpack.c.l.b16 %v127
    %v328 = vunpack.c.l.b16 %v128
    %v329 = vunpack.c.l.b16 %v129
    %v330 = vunpack.c.l.b16 %v130
    %v331 = vunpack.c.l.b16 %v131
    %v332 = vunpack.c.l.b16 %v132
    %v333 = vunpack.c.l.b16 %v133
    %v334 = vunpack.c.l.b16 %v134
    %v335 = vunpack.c.l.b16 %v135
    %v336 = vunpack.c.l.b16 %v136
    %v337 = vunpack.c.l.b16 %v137
    %v338 = vunpack.c.l.b16 %v138
    %v339 = vunpack.c.l.b16 %v139
    %v340 = vunpack.c.l.b16 %v140
    %v341 = vunpack.c.l.b16 %v141
    %v342 = vunpack.c.l.b16 %v142
    %v343 = vunpack.c.l.b16 %v143
    %v344 = vunpack.c.l.b16 %v144
    %v345 = vunpack.c.l.b16 %v145
    %v346 = vunpack.c.l.b16 %v146
    %v347 = vunpack.c.l.b16 %v147
    %v348 = vunpack.c.l.b16 %v148
    %v349 = vunpack.c.l.b16 %v149
    %v350 = vunpack.c.l.b16 %v150
    %v351 = vunpack.c.l.b16 %v151
    %v352 = vunpack.c.l.b16 %v152
    %v353 = vunpack.c.l.b16 %v153
    %v354 = vunpack.c.l.b16 %v154
    %v355 = vunpack.c.l.b16 %v155
    %v356 = vunpack.c.l.b16 %v156
    %v357 = vunpack.c.l.b16 %v157
    %v358 = vunpack.c.l.b16 %v158
    %v359 = vunpack.c.l.b16 %v159
    %v360 = vunpack.c.l.b16 %v160
    %v361 = vunpack.c.l.b16 %v161
    %v362 = vunpack.c.l.b16 %v162
    %v363 = vunpack.c.l.b16 %v163
    %v364 = vunpack.c.l.b16 %v164
    %v365 = vunpack.c.l.b16 %v165
    %v366 = vunpack.c.l.b16 %v166
    %v367 = vunpack.c.l.b16 %v167
    %v368 = vunpack.c.l.b16 %v168
    %v369 = vunpack.c.l.b16 %v169
    %v370 = vunpack.c.l.b16 %v170
    %v371 = vunpack.c.l.b16 %v171
    %v372 = vunpack.c.l.b16 %v172
    %v373 = vunpack.c.l.b16 %v173
    %v374 = vpack.c.b16 %v277, %v276
    %v375 = vpack.c.b16 %v279, %v278
    %v376 = vpack.c.b16 %v281, %v280
    %v377 = vpack.c.b16 %v283, %v282
    %v378 = vpack.c.b16 %v285, %v284
    %v379 = vpack.c.b16 %v287, %v286
    %v380 = vpack.c.b16 %v289, %v288
    %v381 = vpack.c.b16 %v291, %v290
    %v382 = vpack.c.b16 %v293, %v292
    %v383 = vpack.c.b16 %v295, %v294
    %v384 = vpack.c.b16 %v297, %v296
    %v385 = vpack.c.b16 %v299, %v298
    %v386 = vpack.c.b16 %v301, %v300
    %v387 = vpack.c.b16 %v303, %v302
    %v388 = vpack.c.b16 %v305, %v304
    %v389 = vpack.c.b16 %v307, %v306
    %v390 = vpack.c.b16 %v309, %v308
    %v391 = vpack.c.b16 %v311, %v310
    %v392 = vpack.c.b16 %v313, %v312
    %v393 = vpack.c.b16 %v315, %v314
    %v394 = vpack.c.b16 %v317, %v316
    %v395 = vpack.c.b16 %v319, %v318
    %v396 = vpack.c.b16 %v321, %v320
    %v397 = vpack.c.b16 %v323, %v322
    %v398 = vpack.c.b16 %v325, %v324
    %v399 = vpack.c.b16 %v327, %v326
    %v400 = vpack.c.b16 %v329, %v328
    %v401 = vpack.c.b16 %v331, %v330
    %v402 = vpack.c.b16 %v333, %v332
    %v403 = vpack.c.b16 %v335, %v334
    %v404 = vpack.c.b16 %v337, %v336
    %v405 = vpack.c.b16 %v339, %v338
    %v406 = vpack.c.b16 %v341, %v340
    %v407 = vpack.c.b16 %v343, %v342
    %v408 = vpack.c.b16 %v345, %v344
    %v409 = vpack.c.b16 %v347, %v346
    %v410 = vpack.c.b16 %v349, %v348
    %v411 = vpack.c.b16 %v351, %v350
    %v412 = vpack.c.b16 %v353, %v352
    %v413 = vpack.c.b16 %v355, %v354
    %v414 = vpack.c.b16 %v357, %v356
    %v415 = vpack.c.b16 %v359, %v358
    %v416 = vpack.c.b16 %v361, %v360
    %v417 = vpack.c.b16 %v363, %v362
    %v418 = vpack.c.b16 %v365, %v364
    %v419 = vpack.c.b16 %v367, %v366
    %v420 = vpack.c.b16 %v369, %v368
    %v421 = vpack.c.b16 %v371, %v370
    %v422 = vpack.c.b16 %v373, %v372
    %vm472 = vcmask 130048
    %v474 = vsel %vm472, %v75, 0
    %476 = vmatpush.bf16.msra.mxu0 %v381
    %477 = vmatpush.bf16.msra.mxu0 %v380
    %478 = vmatpush.bf16.msra.mxu0 %v379
    %479 = vmatpush.bf16.msra.mxu0 %v378
    %480 = vmatpush.bf16.msra.mxu0 %v377
    %481 = vmatpush.bf16.msra.mxu0 %v376
    %482 = vmatpush.bf16.msra.mxu0 %v375
    %483 = vmatpush.bf16.msra.mxu0 %v374
    %484 = vmatmul.bf16.gmra.mxu0 %v69
    %v485 = vpop.f32.mrf.mxu0
    %v486 = vadd.f32 %v176, %v485
    %v487 = vpop.f32.mrf.mxu0
    %v488 = vadd.f32 %v176, %v487
    %489 = vdwg.mxu0
    %490 = vmatpush.bf16.msra.mxu0 %v389
    %491 = vmatpush.bf16.msra.mxu0 %v388
    %492 = vmatpush.bf16.msra.mxu0 %v387
    %493 = vmatpush.bf16.msra.mxu0 %v386
    %494 = vmatpush.bf16.msra.mxu0 %v385
    %495 = vmatpush.bf16.msra.mxu0 %v384
    %496 = vmatpush.bf16.msra.mxu0 %v383
    %497 = vmatpush.bf16.msra.mxu0 %v382
    %498 = vmatmul.bf16.gmra.mxu0 %v70
    %v499 = vpop.f32.mrf.mxu0
    %v500 = vadd.f32 %v486, %v499
    %v501 = vpop.f32.mrf.mxu0
    %v502 = vadd.f32 %v488, %v501
    %503 = vdwg.mxu0
    %504 = vmatpush.bf16.msra.mxu0 %v397
    %505 = vmatpush.bf16.msra.mxu0 %v396
    %506 = vmatpush.bf16.msra.mxu0 %v395
    %507 = vmatpush.bf16.msra.mxu0 %v394
    %508 = vmatpush.bf16.msra.mxu0 %v393
    %509 = vmatpush.bf16.msra.mxu0 %v392
    %510 = vmatpush.bf16.msra.mxu0 %v391
    %511 = vmatpush.bf16.msra.mxu0 %v390
    %512 = vmatmul.bf16.gmra.mxu0 %v71
    %v513 = vpop.f32.mrf.mxu0
    %v514 = vadd.f32 %v500, %v513
    %v515 = vpop.f32.mrf.mxu0
    %v516 = vadd.f32 %v502, %v515
    %517 = vdwg.mxu0
    %518 = vmatpush.bf16.msra.mxu0 %v405
    %519 = vmatpush.bf16.msra.mxu0 %v404
    %520 = vmatpush.bf16.msra.mxu0 %v403
    %521 = vmatpush.bf16.msra.mxu0 %v402
    %522 = vmatpush.bf16.msra.mxu0 %v401
    %523 = vmatpush.bf16.msra.mxu0 %v400
    %524 = vmatpush.bf16.msra.mxu0 %v399
    %525 = vmatpush.bf16.msra.mxu0 %v398
    %526 = vmatmul.bf16.gmra.mxu0 %v72
    %v527 = vpop.f32.mrf.mxu0
    %v528 = vadd.f32 %v514, %v527
    %v529 = vpop.f32.mrf.mxu0
    %v530 = vadd.f32 %v516, %v529
    %531 = vdwg.mxu0
    %532 = vmatpush.bf16.msra.mxu0 %v413
    %533 = vmatpush.bf16.msra.mxu0 %v412
    %534 = vmatpush.bf16.msra.mxu0 %v411
    %535 = vmatpush.bf16.msra.mxu0 %v410
    %536 = vmatpush.bf16.msra.mxu0 %v409
    %537 = vmatpush.bf16.msra.mxu0 %v408
    %538 = vmatpush.bf16.msra.mxu0 %v407
    %539 = vmatpush.bf16.msra.mxu0 %v406
    %540 = vmatmul.bf16.gmra.mxu0 %v73
    %v541 = vpop.f32.mrf.mxu0
    %v542 = vadd.f32 %v528, %v541
    %v543 = vpop.f32.mrf.mxu0
    %v544 = vadd.f32 %v530, %v543
    %545 = vdwg.mxu0
    %546 = vmatpush.bf16.msra.mxu0 %v421
    %547 = vmatpush.bf16.msra.mxu0 %v420
    %548 = vmatpush.bf16.msra.mxu0 %v419
    %549 = vmatpush.bf16.msra.mxu0 %v418
    %550 = vmatpush.bf16.msra.mxu0 %v417
    %551 = vmatpush.bf16.msra.mxu0 %v416
    %552 = vmatpush.bf16.msra.mxu0 %v415
    %553 = vmatpush.bf16.msra.mxu0 %v414
    %554 = vmatmul.bf16.gmra.mxu0 %v74
    %v555 = vpop.f32.mrf.mxu0
    %v556 = vadd.f32 %v542, %v555
    %v557 = vpop.f32.mrf.mxu0
    %v558 = vadd.f32 %v544, %v557
    %559 = vdwg.mxu0
    %560 = vmatpush.bf16.msra.mxu0 0
    %561 = vmatpush.bf16.msra.mxu0 0
    %562 = vmatpush.bf16.msra.mxu0 0
    %563 = vmatpush.bf16.msra.mxu0 0
    %564 = vmatpush.bf16.msra.mxu0 0
    %565 = vmatpush.bf16.msra.mxu0 0
    %566 = vmatpush.bf16.msra.mxu0 0
    %567 = vmatpush.bf16.msra.mxu0 %v422
    %568 = vmatmul.bf16.gmra.mxu0 %v474
    %v569 = vpop.f32.mrf.mxu0
    %v570 = vadd.f32 %v556, %v569
    %v571 = vpop.f32.mrf.mxu0
    %v572 = vadd.f32 %v558, %v571
    %573 = vdwg.mxu0
    %vm574 = vcmp.gt.f32.partialorder %v570, 0.0
    %vm575 = vcmp.gt.f32.partialorder %v572, 0.0
    %v576 = vmul.f32 %v570, 0.01
    %v577 = vmul.f32 %v572, 0.01
    %v578 = vsel %vm574, %v570, %v576
    %v579 = vsel %vm575, %v572, %v577
    %v580 = vld [vmem:[%s3] sm:$0x1]
    %s581 = sld [smem:[#allocation2]]
    %v582 = vstv %s581
    %583 = vmatpush.xpose.msra.mxu0 0.0
    %584 = vmatpush.xpose.msra.mxu0 0.0
    %585 = vmatpush.xpose.msra.mxu0 0.0
    %586 = vmatpush.xpose.msra.mxu0 0.0
    %587 = vmatpush.xpose.msra.mxu0 0.0
    %588 = vmatpush.xpose.msra.mxu0 0.0
    %589 = vmatpush.xpose.msra.mxu0 0.0
    %590 = vmatpush.xpose.msra.mxu0 0.0
    %591 = vmatpush.xpose.msra.mxu0 0.0
    %592 = vmatpush.xpose.msra.mxu0 0.0
    %593 = vmatpush.xpose.msra.mxu0 0.0
    %594 = vmatpush.xpose.msra.mxu0 0.0
    %595 = vmatpush.xpose.msra.mxu0 0.0
    %596 = vmatpush.xpose.msra.mxu0 0.0
    %597 = vmatpush.xpose.msra.mxu0 %v579
    %598 = vmatpush.xpose.msra.mxu0 %v578
    %599 = vmatmul.f32.gmra.mxu0 %v580
    %v600 = vpop.f32.mrf.mxu0
    %v601 = vadd.f32 %v582, %v600
    %602 = vdwg.mxu0
    %v603 = vsub.f32 0.0, %v601
    %v604 = vmul.f32 %v603, 1.442695
    %v605 = vpow.pop %v604
    %v606 = vadd.f32 %v605, 1.0
    %v607 = vrcp.pop %v606
    %v608 = vmul.f32 %v606, %v607
    %v609 = vsub.f32 1.0, %v608
    %v610 = vmul.f32 %v607, %v609
    %v611 = vadd.f32 %v607, %v610
    %vm612 = vweird.f32 %v606
    %vm613 = vweird.f32 %v607
    %vm614 = vmor %vm612, %vm613
    %v615 = vsel %vm614, %v607, %v611
    %v616 = vand.u32 2147483647, %v606
    %vm617 = vcmp.eq.f32.partialorder %v616, 8.507059e+37
    %v618 = vand.u32 %v606, 2147483648
    %v619 = vor.u32 1.1754944e-38, %v618
    %v620 = vsel %vm617, %v619, %v615
    %v621 = vmul.f32 1.0, %v620
    %vm622 = vcmask 122880
    %623 = vst.msk [vmem:[#allocation8] sm:$0x1] %vm622, %v621
    // Predicated region
    $region30: #{discriminator_forward.1} parent=1 // pred_check
      _
    $region31: #{discriminator_forward.1} parent=1 // pred_check_branch
      %625 = sbr.rel (0) target = $region33
    $region32: #{discriminator_forward.1} parent=1 // pred_region
      %627 = vsyncadd [#allocation5], 0
      %s629 = sshll.u32 [#allocation8], 4
      %s630 = int_to_ptr.vmem [resolvable:$true] %s629
      %s631 = sshll.u32 %s5, 4
      %s632 = int_to_ptr.hbm [resolvable:$true] %s631
      %634 = dma.vmem_to_hbm [thread:$0]  %s630, 16, %s632, [#allocation5]
    $region33: #{discriminator_forward.1} parent=1 // pred_fallthru
      _
    // Predicated region
    $region34: #{discriminator_forward.1} parent=1 // pred_check
      _
    $region35: #{discriminator_forward.1} parent=1 // pred_check_branch
      %636 = sbr.rel (0) target = $region37
    $region36: #{discriminator_forward.1} parent=1 // pred_region
      %638 = dma.done [#allocation5], 16
    $region37: #{discriminator_forward.1} parent=1 // pred_fallthru
      _
    %639 = vsyncpa [#allocation4], 1
    %640 = vsyncpa [#allocation7], 1
    %641 = vsyncpa [#allocation5], 1

</llo_original>
